<compile_context>
chip_gen: v6e
topology: v6e:2x2x1
jax: 0.10.0
libtpu: 0.0.40
codegen_flags: <defaults>
</compile_context>

<pallas_src>
import jax
import jax.numpy as jnp
from jax.experimental import pallas as pl
from jax.experimental.pallas import tpu as pltpu


def _round_up(x, m):
    return ((x + m - 1) // m) * m


def _maybe_pad2(x, rows, cols):
    pr, pc = rows - x.shape[0], cols - x.shape[1]
    if pr == 0 and pc == 0:
        return x
    return jnp.pad(x, ((0, pr), (0, pc)))


def _vmem_capacity_bytes():
    """Physical VMEM per TensorCore; conservative 64 MiB (v7x) fallback."""
    try:
        info = pltpu.get_tpu_info()
        cap = int(getattr(info, "vmem_capacity_bytes", 0))
        if cap > 0:
            return cap
    except Exception:
        pass
    return 64 << 20


# --------------------------------------------------------------------------
# Kernels
# --------------------------------------------------------------------------

def _refusal_scores_kernel(hs_ref, wrd_ref, brd_ref, score_ref):
    # H -> 1 GEMV on the VPU (broadcast weight row) + lane reduction (XLU).
    logits = jnp.sum(hs_ref[...] * wrd_ref[...], axis=-1, keepdims=True) + brd_ref[0, 0]
    score_ref[...] = jnp.broadcast_to(jax.nn.sigmoid(logits), score_ref.shape)


def _refusal_override_kernel(hs_mm_ref, ui_mm_ref, posr_ref, hs_f32_ref, r_ref,
                             wh_ref, wu_ref, wpr_ref, bo_ref, out_ref):
    r = r_ref[:, 0:1]                               # (TB, 1) f32 refusal scores
    # MXU matmuls in the weight dtype (bf16 by default), f32 accumulation.
    override = (
        jnp.dot(hs_mm_ref[...], wh_ref[...], preferred_element_type=jnp.float32)
        + jnp.dot(ui_mm_ref[...], wu_ref[...], preferred_element_type=jnp.float32)
        + jnp.dot(posr_ref[...], wpr_ref[...], preferred_element_type=jnp.float32)
        + bo_ref[...]
    )
    # Blend uses the f32 hs tile of THIS N tile (fixes the full-width/H_pad bug).
    out_ref[...] = hs_f32_ref[...] * (1.0 - r) + override * r


# --------------------------------------------------------------------------
# One-time weight preprocessing (outside the per-call hot path)
# --------------------------------------------------------------------------

def prepare_params(params, hidden_size, num_emotional_dimensions,
                   matmul_dtype=jnp.bfloat16):
    H, E = hidden_size, num_emotional_dimensions
    # Pad H so a 512-wide lane-dense weight tile always divides it (TN=512 for
    # realistic H, TN=H_pad for small H).  Zero padding does not change results.
    H_pad = _round_up(H, 128) if H <= 512 else _round_up(H, 512)
    E_pad = _round_up(E + 1, 128)     # pos columns + folded refusal-score column

    W_ov = params["override_generator_w"].astype(jnp.float32)    # (H, 2H+E+1)
    b_ov = params["override_generator_b"].astype(jnp.float32)    # (H,)
    w_rd = params["refusal_detector_w"].astype(jnp.float32)      # (1, H)
    b_rd = params["refusal_detector_b"].astype(jnp.float32)      # (1,)

    Wh = W_ov[:, 0:H].T                                          # (H, H)
    Wu = W_ov[:, H:2 * H].T                                      # (H, H)
    Wpr = jnp.concatenate(                                       # (E+1, H): wr folded in
        [W_ov[:, 2 * H:2 * H + E].T, W_ov[:, 2 * H + E:2 * H + E + 1].T], axis=0)

    return {
        "wh": _maybe_pad2(Wh, H_pad, H_pad).astype(matmul_dtype),
        "wu": _maybe_pad2(Wu, H_pad, H_pad).astype(matmul_dtype),
        "wpr": _maybe_pad2(Wpr, E_pad, H_pad).astype(matmul_dtype),
        "bo": _maybe_pad2(b_ov.reshape(1, H), 1, H_pad),         # f32 (1, Hp)
        "wrd": _maybe_pad2(w_rd, 1, H_pad),                      # f32 (1, Hp)
        "brd": b_rd.reshape(1, 1),                               # f32 scalar -> SMEM
        "meta": (H, E, H_pad, E_pad),
    }


# --------------------------------------------------------------------------
# Forward
# --------------------------------------------------------------------------

def refusal_override_forward(hidden_states, user_intent, position, prepared):
    """hidden_states: (B,H), user_intent: (B,H), position: (B,E)."""
    H, E, H_pad, E_pad = prepared["meta"]
    wh, wu, wpr = prepared["wh"], prepared["wu"], prepared["wpr"]
    bo, wrd, brd = prepared["bo"], prepared["wrd"], prepared["brd"]
    mm_dtype = wh.dtype
    mm_bytes = jnp.dtype(mm_dtype).itemsize

    hs = hidden_states.astype(jnp.float32)
    ui = user_intent.astype(jnp.float32)
    pos = position.astype(jnp.float32)
    B = hs.shape[0]

    vmem_cap = _vmem_capacity_bytes()
    budget = vmem_cap - (12 << 20)

    # --- generation-aware tile selection -----------------------------------
    B8 = _round_up(B, 8)
    max_tb = 128 if vmem_cap <= (80 << 20) else 512   # v7x: 64 MiB; v5e/v6e: 128 MiB
    TB = min(B8, max_tb)
    TN = min(H_pad, 512)

    def fp(tb, tn):   # double-buffered VMEM footprint of the main kernel
        return (2 * (2 * tb * H_pad + tb * E_pad) * mm_bytes   # hs_mm, ui_mm, posr
                + 2 * tb * tn * 4                              # hs f32 tile
                + 2 * tb * 128 * 4                             # r slab
                + 2 * (2 * H_pad + E_pad) * tn * mm_bytes      # Wh / Wu / Wpr tiles
                + 2 * tn * 4                                   # b_ov tile
                + 2 * tb * tn * 4)                             # out tile

    # TODO(synk): add K-axis tiling (accumulator + extra grid axis) for extreme
    # H where even TB=8 / TN=128 does not fit the VMEM budget.
    while fp(TB, TN) > budget and TN > 128 and TN % 256 == 0:
        TN //= 2
    while fp(TB, TN) > budget and TB > 8 and TB % 16 == 0:
        TB //= 2
    B_pad = _round_up(B8, TB)

    # --- pad activations only when needed, pre-cast to matmul dtype ONCE ----
    hs_p = _maybe_pad2(hs, B_pad, H_pad)                 # f32: refusal GEMV + blend
    hs_mm = hs_p if mm_dtype == jnp.float32 else hs_p.astype(mm_dtype)
    ui_mm = _maybe_pad2(ui, B_pad, H_pad).astype(mm_dtype)
    pos_p = _maybe_pad2(pos, B_pad, E)

    # --- 1) refusal scores (tiny kernel, f32 exact) -------------------------
    TBs = TB
    while 2 * TBs * H_pad * 4 > budget and TBs > 8 and TBs % 16 == 0:
        TBs //= 2
    sc_vmem = int(max(min(2 * TBs * H_pad * 4 + (8 << 20), vmem_cap - (8 << 20)),
                      32 << 20))
    scores = pl.pallas_call(
        _refusal_scores_kernel,
        out_shape=jax.ShapeDtypeStruct((B_pad, 128), jnp.float32),
        grid=(B_pad // TBs,),
        in_specs=[
            pl.BlockSpec((TBs, H_pad), lambda b: (b, 0)),         # hs (f32)
            pl.BlockSpec((1, H_pad), lambda b: (0, 0)),           # w_rd row
            pl.BlockSpec(memory_space=pltpu.MemorySpace.SMEM),    # b_rd scalar
        ],
        out_specs=pl.BlockSpec((TBs, 128), lambda b: (b, 0)),     # lane-dense slab
        compiler_params=pltpu.CompilerParams(
            dimension_semantics=("parallel",),
            vmem_limit_bytes=sc_vmem),
        cost_estimate=pl.CostEstimate(
            flops=2 * B_pad * H_pad,
            transcendentals=B_pad,
            bytes_accessed=B_pad * H_pad * 4 + H_pad * 4 + B_pad * 128 * 4),
    )(hs_p, wrd, brd)

    # Fold the refusal-score column into the (small) position operand; w_r was
    # folded into Wpr in prepare_params, so the kernel needs no r*wr term.
    posr_mm = _maybe_pad2(
        jnp.concatenate([pos_p, scores[:, 0:1]], axis=1), B_pad, E_pad
    ).astype(mm_dtype)

    # --- 2) fused override matmul + blend kernel ----------------------------
    grid = (B_pad // TB, H_pad // TN)
    nb = grid[0]
    vmem_limit = int(max(min(fp(TB, TN) + (8 << 20), vmem_cap - (8 << 20)),
                         32 << 20))

    cost = pl.CostEstimate(
        flops=2 * B_pad * H_pad * (2 * H_pad + E_pad) + 4 * B_pad * H_pad,
        transcendentals=0,
        bytes_accessed=(2 * B_pad * H_pad * mm_bytes                 # hs_mm, ui_mm
                        + B_pad * E_pad * mm_bytes                   # posr
                        + B_pad * H_pad * 4                          # hs f32 tiles
                        + B_pad * 128 * 4                            # r slab
                        + nb * ((2 * H_pad + E_pad) * H_pad * mm_bytes  # weights,
                                + H_pad * 4)                            # re-streamed/tile
                        + B_pad * H_pad * 4),                        # output
    )

    out_p = pl.pallas_call(
        _refusal_override_kernel,
        out_shape=jax.ShapeDtypeStruct((B_pad, H_pad), jnp.float32),
        grid=grid,
        in_specs=[
            pl.BlockSpec((TB, H_pad), lambda b, n: (b, 0)),       # hs (mm dtype)
            pl.BlockSpec((TB, H_pad), lambda b, n: (b, 0)),       # ui (mm dtype)
            pl.BlockSpec((TB, E_pad), lambda b, n: (b, 0)),       # [pos|r] (mm dtype)
            pl.BlockSpec((TB, TN), lambda b, n: (b, n)),          # hs f32 tile (blend)
            pl.BlockSpec((TB, 128), lambda b, n: (b, 0)),         # refusal scores slab
            pl.BlockSpec((H_pad, TN), lambda b, n: (0, n)),       # Wh tile
            pl.BlockSpec((H_pad, TN), lambda b, n: (0, n)),       # Wu tile
            pl.BlockSpec((E_pad, TN), lambda b, n: (0, n)),       # Wpr tile
            pl.BlockSpec((1, TN), lambda b, n: (0, n)),           # b_ov tile
        ],
        out_specs=pl.BlockSpec((TB, TN), lambda b, n: (b, n)),
        compiler_params=pltpu.CompilerParams(
            dimension_semantics=("parallel", "parallel"),         # no cross-tile state
            vmem_limit_bytes=vmem_limit),
        cost_estimate=cost,
    )(hs_mm, ui_mm, posr_mm, hs_p, scores, wh, wu, wpr, bo)

    return out_p[:B, :H], scores[:B, :1]


# --------------------------------------------------------------------------
# Init / reference / test
# --------------------------------------------------------------------------

def init_params(key, hidden_size, num_emotional_dimensions):
    in_features = hidden_size * 2 + num_emotional_dimensions + 1
    k1, k2, k3, k4 = jax.random.split(key, 4)
    lim_ov = 1.0 / jnp.sqrt(in_features)
    lim_rd = 1.0 / jnp.sqrt(hidden_size)
    return {
        "override_generator_w": jax.random.uniform(k1, (hidden_size, in_features),
                                                   jnp.float32, -lim_ov, lim_ov),
        "override_generator_b": jax.random.uniform(k2, (hidden_size,),
                                                   jnp.float32, -lim_ov, lim_ov),
        "refusal_detector_w": jax.random.uniform(k3, (1, hidden_size),
                                                 jnp.float32, -lim_rd, lim_rd),
        "refusal_detector_b": jax.random.uniform(k4, (1,),
                                                 jnp.float32, -lim_rd, lim_rd),
    }


def _reference(hidden_states, user_intent, position, params):
    """Pure-JAX reference replicating the PyTorch forward exactly (f32)."""
    hs = hidden_states.astype(jnp.float32)
    ui = user_intent.astype(jnp.float32)
    pos = position.astype(jnp.float32)
    r = jax.nn.sigmoid(hs @ params["refusal_detector_w"].T + params["refusal_detector_b"])
    override_input = jnp.concatenate([hs, ui, pos, r], axis=1)
    override = override_input @ params["override_generator_w"].T + params["override_generator_b"]
    return hs * (1 - r) + override * r, r


if __name__ == "__main__":
    B, H, E = 2, 32, 4

    key = jax.random.PRNGKey(0)
    k_hs, k_ui, k_pos, k_params = jax.random.split(key, 4)
    hidden_states = jax.random.normal(k_hs, (B, H), jnp.float32)
    user_intent = jax.random.normal(k_ui, (B, H), jnp.float32)
    position = jax.random.normal(k_pos, (B, E), jnp.float32)   # emotional_state.position
    params = init_params(k_params, H, E)

    ref_out, ref_scores = _reference(hidden_states, user_intent, position, params)

    # f32 MXU path: exact module semantics
    prep_f32 = prepare_params(params, H, E, matmul_dtype=jnp.float32)
    out32, sc32 = refusal_override_forward(hidden_states, user_intent, position, prep_f32)
    out32, sc32 = jax.block_until_ready((out32, sc32))
    assert out32.shape == (B, H) and sc32.shape == (B, 1)
    assert jnp.allclose(out32, ref_out, atol=1e-5, rtol=1e-5)
    assert jnp.allclose(sc32, ref_scores, atol=1e-5, rtol=1e-5)

    # bf16 MXU path (default perf config): scores stay exact (f32 path),
    # output within bf16 matmul tolerance of the f32 reference.
    prep_bf16 = prepare_params(params, H, E)
    out16, sc16 = refusal_override_forward(hidden_states, user_intent, position, prep_bf16)
    out16, sc16 = jax.block_until_ready((out16, sc16))
    assert out16.shape == (B, H) and sc16.shape == (B, 1)
    assert jnp.allclose(sc16, ref_scores, atol=1e-5, rtol=1e-5)
    assert jnp.allclose(out16, ref_out, atol=5e-2, rtol=5e-2)

    print("KERNEL_OK")
</pallas_src>

<mosaic_0001>
module attributes {stable_mosaic.version = 11 : i64} {
  func.func @_refusal_scores_kernel(%arg0: i32, %arg1: memref<8x128xf32, #tpu.memory_space<vmem>>, %arg2: memref<1x128xf32, #tpu.memory_space<vmem>>, %arg3: memref<1x1xf32, #tpu.memory_space<smem>>, %arg4: memref<8x128xf32, #tpu.memory_space<vmem>>) attributes {dimension_semantics = [#tpu.dimension_semantics<parallel>], iteration_bounds = array<i64: 1>, scalar_prefetch = 0 : i64, scratch_operands = 0 : i64, tpu.core_type = #tpu.core_type<tc>, window_params = [{transform_indices = @transform_0, window_bounds = array<i64: 8, 128>}, {pipeline_mode = #tpu.pipeline_mode<synchronous>, transform_indices = @transform_1, window_bounds = array<i64: 1, 128>}, {transform_indices = @transform_2, window_bounds = array<i64: 1, 1>}, {transform_indices = @transform_3, window_bounds = array<i64: 8, 128>}]} {
    %c0 = arith.constant 0 : index
    %c0_0 = arith.constant 0 : index
    %0 = vector.load %arg1[%c0, %c0_0] : memref<8x128xf32, #tpu.memory_space<vmem>>, vector<8x128xf32>
    %c0_1 = arith.constant 0 : index
    %c0_2 = arith.constant 0 : index
    %1 = vector.load %arg2[%c0_1, %c0_2] : memref<1x128xf32, #tpu.memory_space<vmem>>, vector<1x128xf32>
    %2 = vector.broadcast %1 : vector<1x128xf32> to vector<8x128xf32>
    %3 = arith.mulf %0, %2 : vector<8x128xf32>
    %cst = arith.constant dense<0.000000e+00> : vector<8xf32>
    %4 = vector.multi_reduction <add>, %3, %cst [1] : vector<8x128xf32> to vector<8xf32>
    %5 = vector.shape_cast %4 : vector<8xf32> to vector<8x1xf32>
    %c0_3 = arith.constant 0 : index
    %c0_4 = arith.constant 0 : index
    %6 = memref.load %arg3[%c0_3, %c0_4] : memref<1x1xf32, #tpu.memory_space<smem>>
    %7 = vector.broadcast %6 : f32 to vector<8x1xf32>
    %8 = arith.addf %5, %7 : vector<8x1xf32>
    %9 = arith.negf %8 : vector<8x1xf32>
    %10 = math.exp %9 : vector<8x1xf32>
    %cst_5 = arith.constant 1.000000e+00 : f32
    %11 = vector.broadcast %cst_5 : f32 to vector<8x1xf32>
    %12 = arith.addf %11, %10 : vector<8x1xf32>
    %13 = arith.divf %11, %12 : vector<8x1xf32>
    %14 = vector.shape_cast %13 : vector<8x1xf32> to vector<8x1xf32>
    %15 = vector.broadcast %14 : vector<8x1xf32> to vector<8x128xf32>
    %c0_6 = arith.constant 0 : index
    %c0_7 = arith.constant 0 : index
    %16 = vector.load %arg4[%c0_6, %c0_7] : memref<8x128xf32, #tpu.memory_space<vmem>>, vector<8x128xf32>
    tpu.vector_store %arg4[%c0_6, %c0_7], %15 {strides = array<i32>} : memref<8x128xf32, #tpu.memory_space<vmem>>, vector<8x128xf32>,
    return
  }
  func.func @transform_0(%arg0: i32) -> (i32, i32) {
    %c0_i32 = arith.constant 0 : i32
    %c0_i32_0 = arith.constant 0 : i32
    return %arg0, %c0_i32 : i32, i32
  }
  func.func @transform_1(%arg0: i32) -> (i32, i32) {
    %c0_i32 = arith.constant 0 : i32
    %c0_i32_0 = arith.constant 0 : i32
    %c0_i32_1 = arith.constant 0 : i32
    return %c0_i32, %c0_i32_0 : i32, i32
  }
  func.func @transform_2(%arg0: i32) -> (i32, i32) {
    %c0_i32 = arith.constant 0 : i32
    %c0_i32_0 = arith.constant 0 : i32
    %c0_i32_1 = arith.constant 0 : i32
    return %c0_i32, %c0_i32_0 : i32, i32
  }
  func.func @transform_3(%arg0: i32) -> (i32, i32) {
    %c0_i32 = arith.constant 0 : i32
    %c0_i32_0 = arith.constant 0 : i32
    return %arg0, %c0_i32 : i32, i32
  }
}

</mosaic_0001>

<llo_original>
// kernel: tpu_custom_call.1
$region0: #{tpu_custom_call.1}
  #allocation0 [shape = 'u32[]', space=smem, size = 0x4, offset = 0x4, fixed_abs, tag = 'smem constant byte address 0x4 - core index']
  #allocation1 [shape = 'u32[144,128]{1,0:T(1,128)}', space=vmem, size = 0x12000, scoped, tag = 'internal scratch']
  #allocation2 [shape = 'f32[1,1]{1,0:T(1,128)S(6)}', space=smem, size = 0x200, scoped, tag = 'scoped memory for tpu_custom_call.1']
  %s0 = inlined_call_operand.hbm [shape: f32[8,128], index: 0, kind: input, shape index: {}]
  %s1 = inlined_call_operand.vmem [shape: f32[1,128], index: 1, kind: input, shape index: {}]
  %s2 = inlined_call_operand.<no memory space> [shape: f32[1,1], index: 2, kind: input, shape index: {}]
  %s3 = inlined_call_operand.hbm [shape: f32[8,128], index: 3, kind: output, shape index: {}]
  %s4 = sld [smem:[#allocation0]]
  $region26: #{tpu_custom_call.1} parent=0
    _
  %s6 = ssub.s32 1, %s4
  %s7 = scalar_select 0, %s6, %s4
  %8 = sst [smem:[#allocation2]] %s2
  $region1: #{tpu_custom_call.1} parent=0
    #allocation3 [shape = 'u8[4096]{0}', space=vmem, size = 0x1000, scoped, tag = 'input window, operand 0, single buffered']
    #allocation4 [shape = 's32[1]{0}', space=sflag, size = 0x4, scoped, tag = 'scoped memory for tpu_custom_call.1']
    #allocation5 [shape = 's32[1]{0}', space=sflag, size = 0x4, scoped, tag = 'scoped memory for tpu_custom_call.1']
    #allocation6 [shape = 'u8[4096]{0}', space=vmem, size = 0x1000, scoped, tag = 'output window, operand 0, single buffered']
    %9 = vsyncpa [#allocation4], 0
    %10 = vsyncpa [#allocation5], 0
    // Predicated region
    $region2: #{tpu_custom_call.1} parent=1 // pred_check
      _
    $region3: #{tpu_custom_call.1} parent=1 // pred_check_branch
      %12 = sbr.rel (0) target = $region5
    $region4: #{tpu_custom_call.1} parent=1 // pred_region
      %s14 = ssub.s32 128, 128
      %15 = vsyncadd [#allocation4], %s14
      %s17 = sshll.u32 [#allocation3], 4
      %s18 = int_to_ptr.vmem [resolvable:$true] %s17
      %20 = dma.hbm_to_vmem [thread:$0]  %s0, 128, %s18, [#allocation4]
    $region5: #{tpu_custom_call.1} parent=1 // pred_fallthru
      _
    // Predicated region
    $region6: #{tpu_custom_call.1} parent=1 // pred_check
      _
    $region7: #{tpu_custom_call.1} parent=1 // pred_check_branch
      %22 = sbr.rel (0) target = $region9
    $region8: #{tpu_custom_call.1} parent=1 // pred_region
      _
    $region9: #{tpu_custom_call.1} parent=1 // pred_fallthru
      _
    // Predicated region
    $region10: #{tpu_custom_call.1} parent=1 // pred_check
      _
    $region11: #{tpu_custom_call.1} parent=1 // pred_check_branch
      %24 = sbr.rel (0) target = $region13
    $region12: #{tpu_custom_call.1} parent=1 // pred_region
      _
    $region13: #{tpu_custom_call.1} parent=1 // pred_fallthru
      _
    // Predicated region
    $region14: #{tpu_custom_call.1} parent=1 // pred_check
      _
    $region15: #{tpu_custom_call.1} parent=1 // pred_check_branch
      %26 = sbr.rel (0) target = $region17
    $region16: #{tpu_custom_call.1} parent=1 // pred_region
      %27 = dma.done [#allocation4], 128
    $region17: #{tpu_custom_call.1} parent=1 // pred_fallthru
      _
    %v28 = vld [vmem:[#allocation3] sm:$0xff]
    %v29 = vld [vmem:[%s1] sm:$0x1]
    %v31 = vlaneseq
    %v32 = vshrl.u32 %v31, 7
    %v33 = vsub.s32 0, %v32
    %v34 = vrot.slane %v29, %v33
    %v36 = vmul.f32 %v28, %v34
    %37 = vadd.xlane.f32.xlu0 %v36
    %v38 = vpop.xlane.xlu0 %37
    %s39 = sld [smem:[#allocation2]]
    %v40 = vstv %s39
    %v41 = vadd.f32 %v38, %v40
    %v42 = vxor.u32 %v41, 2147483648
    %v43 = vmul.f32 %v42, 1.442695
    %v44 = vpow.pop %v43
    %v45 = vadd.f32 %v44, 1.0
    %v46 = vrcp.pop %v45
    %v47 = vmul.f32 1.0, %v46
    %48 = vst [vmem:[#allocation6] sm:$0xff] %v47
    // Predicated region
    $region18: #{tpu_custom_call.1} parent=1 // pred_check
      _
    $region19: #{tpu_custom_call.1} parent=1 // pred_check_branch
      %50 = sbr.rel (0) target = $region21
    $region20: #{tpu_custom_call.1} parent=1 // pred_region
      %s52 = ssub.s32 128, 128
      %53 = vsyncadd [#allocation5], %s52
      %s55 = sshll.u32 [#allocation6], 4
      %s56 = int_to_ptr.vmem [resolvable:$true] %s55
      %58 = dma.vmem_to_hbm [thread:$0]  %s56, 128, %s3, [#allocation5]
    $region21: #{tpu_custom_call.1} parent=1 // pred_fallthru
      _
    // Predicated region
    $region22: #{tpu_custom_call.1} parent=1 // pred_check
      _
    $region23: #{tpu_custom_call.1} parent=1 // pred_check_branch
      %60 = sbr.rel (0) target = $region25
    $region24: #{tpu_custom_call.1} parent=1 // pred_region
      %61 = dma.done [#allocation5], 128
    $region25: #{tpu_custom_call.1} parent=1 // pred_fallthru
      _
    %62 = vsyncpa [#allocation4], 1
    %63 = vsyncpa [#allocation5], 1

</llo_original>
